<compile_context>
chip_gen: v5e
topology: v5e:2x2
jax: 0.10.0
libtpu: 0.0.40
codegen_flags: <defaults>
</compile_context>

<pallas_src>
import jax
import jax.numpy as jnp
import numpy as np
from jax import lax
from jax.experimental import pallas as pl
from jax.experimental.pallas import tpu as pltpu

EPS = 1e-5


def _make_kernel(K, M, n_layers, eps):
    def kernel(x_ref, *refs):
        w_refs = refs[:n_layers]
        o_ref = refs[n_layers]

        h = x_ref[0].astype(jnp.float32)                   # (C_in, K*M)
        for w_ref in w_refs:
            # 1x1 conv == channel matmul on the MXU: (C_out, C_in) @ (C_in, K*M)
            # TODO(synk): optional bf16 cast of the matmul operands on v6e/v7x
            # once the matmul is shown to be the binding unit (keep stats f32).
            h = jnp.dot(w_ref[...], h, preferred_element_type=jnp.float32)
            # InstanceNorm2d (affine=False): stats over all K*M spatial elems,
            # per channel.  Reuse hc for both var and the normalize step.
            mean = jnp.mean(h, axis=1, keepdims=True)      # (C_out, 1)
            hc = h - mean
            var = jnp.mean(hc * hc, axis=1, keepdims=True)
            # normalize + ReLU
            h = jnp.maximum(hc * lax.rsqrt(var + eps), 0.0)

        # max over K (dim=2 of the original NCHW tensor)
        if M % 128 == 0:
            # lane-tile-aligned static slices: views, K-1 VPU maxes, no relayout
            m = h[:, 0:M]
            for k in range(1, K):
                m = jnp.maximum(m, h[:, k * M:(k + 1) * M])
        else:
            # single-pass reshape + reduce (tile-aligned path unavailable)
            m = jnp.max(h.reshape(h.shape[0], K, M), axis=1)
        o_ref[0] = m                                       # (C_out, M)

    return kernel


def local_feature_fused(x, weights, eps=EPS):
    """x: (B, C1, K, M) float32; weights: list of (C_out_i, C_in_i) matrices
    (PyTorch Conv2d weight with the trailing 1x1 dims squeezed).

    Returns (B, C_last, M), matching the PyTorch module output.
    """
    B, C1, K, M = x.shape
    n_layers = len(weights)
    C_out = int(weights[-1].shape[0])
    KM = K * M

    # NCHW -> (B, C1, K*M): free reshape (last two dims are contiguous).
    x_flat = x.reshape(B, C1, KM)

    in_specs = [pl.BlockSpec((1, C1, KM), lambda b: (b, 0, 0))]
    for w in weights:
        # Same block index every grid step -> weights stay resident in VMEM.
        in_specs.append(pl.BlockSpec(w.shape, lambda b: (0, 0)))

    # Explicit VMEM budget: double-buffered input block + resident weights +
    # live f32 activations (current layer, next layer, centered temp) +
    # double-buffered output block, plus headroom.
    max_c = max([C1] + [int(w.shape[0]) for w in weights])
    vmem_bytes = (2 * C1 * KM * 4
                  + 2 * sum(int(w.size) for w in weights) * 4
                  + 3 * max_c * KM * 4
                  + 2 * C_out * M * 4
                  + (2 << 20))
    vmem_bytes = int(min(max(vmem_bytes, 4 << 20), 64 << 20))

    flops = 2 * B * KM * sum(int(w.shape[0]) * int(w.shape[1]) for w in weights)
    bytes_accessed = 4 * (int(x_flat.size)
                          + sum(int(w.size) for w in weights)
                          + B * C_out * M)
    transcendentals = B * sum(int(w.shape[0]) for w in weights)  # rsqrt per chan

    # TODO(synk): for very large K*M (full ngenet point clouds) add a spatial
    # grid axis with two-pass instance-norm statistics so the per-batch working
    # set fits v7x's 64 MiB VMEM; this single-block-per-batch design assumes
    # the activations fit the budget computed above.
    out = pl.pallas_call(
        _make_kernel(K, M, n_layers, eps),
        out_shape=jax.ShapeDtypeStruct((B, C_out, M), jnp.float32),
        grid_spec=pltpu.PrefetchScalarGridSpec(
            num_scalar_prefetch=0,
            grid=(B,),
            in_specs=in_specs,
            out_specs=pl.BlockSpec((1, C_out, M), lambda b: (b, 0, 0)),
        ),
        compiler_params=pltpu.CompilerParams(
            dimension_semantics=("parallel",),
            vmem_limit_bytes=vmem_bytes),
        cost_estimate=pl.CostEstimate(
            flops=int(flops),
            transcendentals=int(transcendentals),
            bytes_accessed=int(bytes_accessed)),
    )(x_flat, *weights)

    return out  # already (B, C_out, M) -- matches PyTorch output layout


def _reference(x, weights, eps=EPS):
    """Pure-JAX reference mirroring the PyTorch forward exactly."""
    h = x
    for w in weights:                                  # w: (C_out, C_in)
        h = jnp.einsum("oi,bikm->bokm", w, h)          # 1x1 conv, no bias
        mean = jnp.mean(h, axis=(2, 3), keepdims=True)
        var = jnp.mean(jnp.square(h - mean), axis=(2, 3), keepdims=True)
        h = (h - mean) / jnp.sqrt(var + eps)
        h = jnp.maximum(h, 0.0)
    return jnp.max(h, axis=2)                          # max over K


if __name__ == "__main__":
    # Small shapes consistent with the module: x is (B, C1, K, M).
    # M = 128 keeps the lane axis dense and the max-over-K epilogue tile-aligned.
    B, C1, K, M = 2, 4, 8, 128
    out_dims = (16, 32)

    key = jax.random.PRNGKey(0)
    kx, *kws = jax.random.split(key, 1 + len(out_dims))

    x = jax.random.normal(kx, (B, C1, K, M), dtype=jnp.float32)

    # Deterministic weight init.  PyTorch Conv2d weight is (out, in, 1, 1);
    # we store the squeezed (out, in) matrix used directly by the kernel.
    weights = []
    in_dim = C1
    for kw, out_dim in zip(kws, out_dims):
        fan_in = in_dim
        w = jax.random.uniform(
            kw, (out_dim, in_dim), dtype=jnp.float32,
            minval=-1.0, maxval=1.0) / jnp.sqrt(jnp.float32(fan_in))
        weights.append(w)
        in_dim = out_dim

    y = local_feature_fused(x, weights)
    y = jax.block_until_ready(y)

    y_ref = jax.block_until_ready(_reference(x, weights))

    assert y.shape == (B, out_dims[-1], M), y.shape
    np.testing.assert_allclose(np.asarray(y), np.asarray(y_ref),
                               rtol=1e-4, atol=1e-4)
    print("KERNEL_OK")
</pallas_src>

<mosaic_0001>
module attributes {stable_mosaic.version = 11 : i64} {
  func.func @kernel(%arg0: i32, %arg1: memref<1x4x1024xf32, #tpu.memory_space<vmem>>, %arg2: memref<16x4xf32, #tpu.memory_space<vmem>>, %arg3: memref<32x16xf32, #tpu.memory_space<vmem>>, %arg4: memref<1x32x128xf32, #tpu.memory_space<vmem>>) attributes {dimension_semantics = [#tpu.dimension_semantics<parallel>], iteration_bounds = array<i64: 2>, scalar_prefetch = 0 : i64, scratch_operands = 0 : i64, tpu.core_type = #tpu.core_type<tc>, window_params = [{transform_indices = @transform_0, window_bounds = array<i64: 1, 4, 1024>}, {pipeline_mode = #tpu.pipeline_mode<synchronous>, transform_indices = @transform_1, window_bounds = array<i64: 16, 4>}, {pipeline_mode = #tpu.pipeline_mode<synchronous>, transform_indices = @transform_2, window_bounds = array<i64: 32, 16>}, {transform_indices = @transform_3, window_bounds = array<i64: 1, 32, 128>}]} {
    %c0 = arith.constant 0 : index
    %c0_0 = arith.constant 0 : index
    %c0_1 = arith.constant 0 : index
    %0 = vector.load %arg1[%c0, %c0_0, %c0_1] : memref<1x4x1024xf32, #tpu.memory_space<vmem>>, vector<1x4x1024xf32>
    %1 = vector.shape_cast %0 : vector<1x4x1024xf32> to vector<4x1024xf32>
    %c0_2 = arith.constant 0 : index
    %c0_3 = arith.constant 0 : index
    %2 = vector.load %arg2[%c0_2, %c0_3] : memref<16x4xf32, #tpu.memory_space<vmem>>, vector<16x4xf32>
    %cst = arith.constant dense<0.000000e+00> : vector<16x1024xf32>
    %3 = tpu.matmul %2, %1, %cst {dimension_numbers = #tpu.dot_dimension_numbers<[1], [0], [0], [1], [0, 0, 1, 1], [], []>} : vector<16x4xf32>, vector<4x1024xf32>, vector<16x1024xf32> -> vector<16x1024xf32>
    %cst_4 = arith.constant dense<0.000000e+00> : vector<16xf32>
    %4 = vector.multi_reduction <add>, %3, %cst_4 [1] : vector<16x1024xf32> to vector<16xf32>
    %5 = vector.shape_cast %4 : vector<16xf32> to vector<16x1xf32>
    %cst_5 = arith.constant 1.024000e+03 : f32
    %6 = vector.broadcast %cst_5 : f32 to vector<16x1xf32>
    %7 = arith.divf %5, %6 : vector<16x1xf32>
    %8 = vector.broadcast %7 : vector<16x1xf32> to vector<16x1024xf32>
    %9 = arith.subf %3, %8 : vector<16x1024xf32>
    %10 = arith.mulf %9, %9 : vector<16x1024xf32>
    %cst_6 = arith.constant dense<0.000000e+00> : vector<16xf32>
    %11 = vector.multi_reduction <add>, %10, %cst_6 [1] : vector<16x1024xf32> to vector<16xf32>
    %12 = vector.shape_cast %11 : vector<16xf32> to vector<16x1xf32>
    %cst_7 = arith.constant 1.024000e+03 : f32
    %13 = vector.broadcast %cst_7 : f32 to vector<16x1xf32>
    %14 = arith.divf %12, %13 : vector<16x1xf32>
    %cst_8 = arith.constant 9.99999974E-6 : f32
    %15 = vector.broadcast %cst_8 : f32 to vector<16x1xf32>
    %16 = arith.addf %14, %15 : vector<16x1xf32>
    %17 = math.rsqrt %16 : vector<16x1xf32>
    %18 = vector.broadcast %17 : vector<16x1xf32> to vector<16x1024xf32>
    %19 = arith.mulf %9, %18 : vector<16x1024xf32>
    %cst_9 = arith.constant 0.000000e+00 : f32
    %20 = vector.broadcast %cst_9 : f32 to vector<16x1024xf32>
    %21 = arith.maximumf %19, %20 : vector<16x1024xf32>
    %c0_10 = arith.constant 0 : index
    %c0_11 = arith.constant 0 : index
    %22 = vector.load %arg3[%c0_10, %c0_11] : memref<32x16xf32, #tpu.memory_space<vmem>>, vector<32x16xf32>
    %cst_12 = arith.constant dense<0.000000e+00> : vector<32x1024xf32>
    %23 = tpu.matmul %22, %21, %cst_12 {dimension_numbers = #tpu.dot_dimension_numbers<[1], [0], [0], [1], [0, 0, 1, 1], [], []>} : vector<32x16xf32>, vector<16x1024xf32>, vector<32x1024xf32> -> vector<32x1024xf32>
    %cst_13 = arith.constant dense<0.000000e+00> : vector<32xf32>
    %24 = vector.multi_reduction <add>, %23, %cst_13 [1] : vector<32x1024xf32> to vector<32xf32>
    %25 = vector.shape_cast %24 : vector<32xf32> to vector<32x1xf32>
    %cst_14 = arith.constant 1.024000e+03 : f32
    %26 = vector.broadcast %cst_14 : f32 to vector<32x1xf32>
    %27 = arith.divf %25, %26 : vector<32x1xf32>
    %28 = vector.broadcast %27 : vector<32x1xf32> to vector<32x1024xf32>
    %29 = arith.subf %23, %28 : vector<32x1024xf32>
    %30 = arith.mulf %29, %29 : vector<32x1024xf32>
    %cst_15 = arith.constant dense<0.000000e+00> : vector<32xf32>
    %31 = vector.multi_reduction <add>, %30, %cst_15 [1] : vector<32x1024xf32> to vector<32xf32>
    %32 = vector.shape_cast %31 : vector<32xf32> to vector<32x1xf32>
    %cst_16 = arith.constant 1.024000e+03 : f32
    %33 = vector.broadcast %cst_16 : f32 to vector<32x1xf32>
    %34 = arith.divf %32, %33 : vector<32x1xf32>
    %cst_17 = arith.constant 9.99999974E-6 : f32
    %35 = vector.broadcast %cst_17 : f32 to vector<32x1xf32>
    %36 = arith.addf %34, %35 : vector<32x1xf32>
    %37 = math.rsqrt %36 : vector<32x1xf32>
    %38 = vector.broadcast %37 : vector<32x1xf32> to vector<32x1024xf32>
    %39 = arith.mulf %29, %38 : vector<32x1024xf32>
    %cst_18 = arith.constant 0.000000e+00 : f32
    %40 = vector.broadcast %cst_18 : f32 to vector<32x1024xf32>
    %41 = arith.maximumf %39, %40 : vector<32x1024xf32>
    %42 = vector.extract_strided_slice %41 {offsets = [0, 0], sizes = [32, 128], strides = [1, 1]} : vector<32x1024xf32> to vector<32x128xf32>
    %43 = vector.extract_strided_slice %41 {offsets = [0, 128], sizes = [32, 128], strides = [1, 1]} : vector<32x1024xf32> to vector<32x128xf32>
    %44 = arith.maximumf %42, %43 : vector<32x128xf32>
    %45 = vector.extract_strided_slice %41 {offsets = [0, 256], sizes = [32, 128], strides = [1, 1]} : vector<32x1024xf32> to vector<32x128xf32>
    %46 = arith.maximumf %44, %45 : vector<32x128xf32>
    %47 = vector.extract_strided_slice %41 {offsets = [0, 384], sizes = [32, 128], strides = [1, 1]} : vector<32x1024xf32> to vector<32x128xf32>
    %48 = arith.maximumf %46, %47 : vector<32x128xf32>
    %49 = vector.extract_strided_slice %41 {offsets = [0, 512], sizes = [32, 128], strides = [1, 1]} : vector<32x1024xf32> to vector<32x128xf32>
    %50 = arith.maximumf %48, %49 : vector<32x128xf32>
    %51 = vector.extract_strided_slice %41 {offsets = [0, 640], sizes = [32, 128], strides = [1, 1]} : vector<32x1024xf32> to vector<32x128xf32>
    %52 = arith.maximumf %50, %51 : vector<32x128xf32>
    %53 = vector.extract_strided_slice %41 {offsets = [0, 768], sizes = [32, 128], strides = [1, 1]} : vector<32x1024xf32> to vector<32x128xf32>
    %54 = arith.maximumf %52, %53 : vector<32x128xf32>
    %55 = vector.extract_strided_slice %41 {offsets = [0, 896], sizes = [32, 128], strides = [1, 1]} : vector<32x1024xf32> to vector<32x128xf32>
    %56 = arith.maximumf %54, %55 : vector<32x128xf32>
    %c0_19 = arith.constant 0 : index
    %c0_20 = arith.constant 0 : index
    %c0_21 = arith.constant 0 : index
    %57 = vector.load %arg4[%c0_19, %c0_20, %c0_21] : memref<1x32x128xf32, #tpu.memory_space<vmem>>, vector<1x32x128xf32>
    %58 = vector.shape_cast %57 : vector<1x32x128xf32> to vector<32x128xf32>
    %59 = vector.shape_cast %56 : vector<32x128xf32> to vector<1x32x128xf32>
    tpu.vector_store %arg4[%c0_19, %c0_20, %c0_21], %59 {strides = array<i32>} : memref<1x32x128xf32, #tpu.memory_space<vmem>>, vector<1x32x128xf32>,
    return
  }
  func.func @transform_0(%arg0: i32) -> (i32, i32, i32) {
    %c0_i32 = arith.constant 0 : i32
    %c0_i32_0 = arith.constant 0 : i32
    %c0_i32_1 = arith.constant 0 : i32
    return %arg0, %c0_i32, %c0_i32_0 : i32, i32, i32
  }
  func.func @transform_1(%arg0: i32) -> (i32, i32) {
    %c0_i32 = arith.constant 0 : i32
    %c0_i32_0 = arith.constant 0 : i32
    %c0_i32_1 = arith.constant 0 : i32
    return %c0_i32, %c0_i32_0 : i32, i32
  }
  func.func @transform_2(%arg0: i32) -> (i32, i32) {
    %c0_i32 = arith.constant 0 : i32
    %c0_i32_0 = arith.constant 0 : i32
    %c0_i32_1 = arith.constant 0 : i32
    return %c0_i32, %c0_i32_0 : i32, i32
  }
  func.func @transform_3(%arg0: i32) -> (i32, i32, i32) {
    %c0_i32 = arith.constant 0 : i32
    %c0_i32_0 = arith.constant 0 : i32
    %c0_i32_1 = arith.constant 0 : i32
    return %arg0, %c0_i32, %c0_i32_0 : i32, i32, i32
  }
}

</mosaic_0001>

<llo_original>
// kernel: tpu_custom_call.1
$region0: #{tpu_custom_call.1}
  #allocation0 [shape = 'u32[]', space=smem, size = 0x4, offset = 0x4, fixed_abs, tag = 'smem constant byte address 0x4 - core index']
  #allocation1 [shape = 'u32[72,128]{1,0:T(1,128)}', space=vmem, size = 0x9000, scoped, tag = 'internal scratch']
  %s0 = inlined_call_operand.vmem [shape: f32[2,4,1024], index: 0, kind: input, shape index: {}]
  %s1 = inlined_call_operand.vmem [shape: f32[16,4], index: 1, kind: input, shape index: {}]
  %s2 = inlined_call_operand.vmem [shape: f32[32,16], index: 2, kind: input, shape index: {}]
  %s3 = inlined_call_operand.hbm [shape: f32[2,32,128], index: 3, kind: output, shape index: {}]
  %s4 = sld [smem:[#allocation0]]
  $region45: #{tpu_custom_call.1} parent=0
    _
  %s6 = ssub.s32 1, %s4
  %s7 = scalar_select 0, %s6, %s4
  $region1: #{tpu_custom_call.1} parent=0
    #allocation2 [shape = 'u8[32768]{0}', space=vmem, size = 0x8000, scoped, tag = 'output window, operand 0']
    #allocation3 [shape = 's32[2]{0}', space=sflag, size = 0x8, scoped, tag = 'scoped memory for tpu_custom_call.1']
    %8 = vsyncpa [#allocation3], 0
    %s9 = scalar_lea.sflag [#allocation3], 1
    %10 = vsyncpa %s9, 0
    loop: start=0, step=1, limit=4
    $region2: #{tpu_custom_call.1} parent=1 // loop_pre_header
      _
    $region3: #{tpu_custom_call.1} parent=1 // loop_header
      %s12 = sphi 0, %s16
      %p13 = scmp.ge.s32.totalorder %s12, 4
      %s22 = sphi 0, %s24
      %s25 = sphi 0, %s22
      %s26 = sphi 0, %s25
      %s42 = sphi 0, %s26
      %s46 = sphi 0, %s46
      %s48 = sphi 0, %s46
      %s49 = sphi 0, %s48
      %s63 = sphi 0, %s49
      %s67 = sphi 0, %s67
      %s69 = sphi 0, %s67
      %s70 = sphi 0, %s69
      %s84 = sphi 0, %s70
      %s90 = sphi 0, %s92
      %s93 = sphi 0, %s90
      %s94 = sphi 0, %s93
      %s110 = sphi 0, %s94
    $region4: #{tpu_custom_call.1} parent=1 // loop_header_branch
      %15 = sbr.rel (%p13) target = $region8
    $region5: #{tpu_custom_call.1} parent=1 // loop_body
      %s17 = ssub.s32 %s12, 1
      %s18 = ssub.s32 %s12, 2
      %s19 = sadd.s32 %s12, 1
      %s20 = ssub.s32 %s12, %s19
      %p21 = scmp.eq.s32.totalorder %s20, 0
      %s23 = sadd.s32 %s22, 1
      %s24 = scalar_select %p21, %s22, %s23
      %p27 = pneg %p21
      %p28 = scmp.eq.s32.totalorder %s12, 1
      %p29 = por %p27, %p28
      %p30 = scmp.ne.s32.totalorder %s22, %s25
      %p31 = scmp.eq.s32.totalorder %s12, 0
      %p32 = por %p30, %p31
      %p33 = scmp.ne.s32.totalorder %s22, %s25
      %p34 = scmp.eq.s32.totalorder %s17, 1
      %p35 = por %p33, %p34
      %p36 = scmp.ne.s32.totalorder %s25, %s26
      %p37 = scmp.eq.s32.totalorder %s17, 0
      %p38 = por %p36, %p37
      %p39 = scmp.ne.s32.totalorder %s25, %s26
      %p40 = scmp.eq.s32.totalorder %s18, 1
      %p41 = por %p39, %p40
      %p43 = scmp.ne.s32.totalorder %s26, %s42
      %p44 = scmp.eq.s32.totalorder %s18, 0
      %p45 = por %p43, %p44
      %s47 = sadd.s32 %s46, 1
      %p50 = scmp.eq.s32.totalorder %s12, 1
      %p51 = scmp.ne.s32.totalorder %s46, %s48
      %p52 = scmp.eq.s32.totalorder %s12, 0
      %p53 = por %p51, %p52
      %p54 = scmp.ne.s32.totalorder %s46, %s48
      %p55 = scmp.eq.s32.totalorder %s17, 1
      %p56 = por %p54, %p55
      %p57 = scmp.ne.s32.totalorder %s48, %s49
      %p58 = scmp.eq.s32.totalorder %s17, 0
      %p59 = por %p57, %p58
      %p60 = scmp.ne.s32.totalorder %s48, %s49
      %p61 = scmp.eq.s32.totalorder %s18, 1
      %p62 = por %p60, %p61
      %p64 = scmp.ne.s32.totalorder %s49, %s63
      %p65 = scmp.eq.s32.totalorder %s18, 0
      %p66 = por %p64, %p65
      %s68 = sadd.s32 %s67, 1
      %p71 = scmp.eq.s32.totalorder %s12, 1
      %p72 = scmp.ne.s32.totalorder %s67, %s69
      %p73 = scmp.eq.s32.totalorder %s12, 0
      %p74 = por %p72, %p73
      %p75 = scmp.ne.s32.totalorder %s67, %s69
      %p76 = scmp.eq.s32.totalorder %s17, 1
      %p77 = por %p75, %p76
      %p78 = scmp.ne.s32.totalorder %s69, %s70
      %p79 = scmp.eq.s32.totalorder %s17, 0
      %p80 = por %p78, %p79
      %p81 = scmp.ne.s32.totalorder %s69, %s70
      %p82 = scmp.eq.s32.totalorder %s18, 1
      %p83 = por %p81, %p82
      %p85 = scmp.ne.s32.totalorder %s70, %s84
      %p86 = scmp.eq.s32.totalorder %s18, 0
      %p87 = por %p85, %p86
      %s88 = ssub.s32 %s12, %s19
      %p89 = scmp.eq.s32.totalorder %s88, 0
      %s91 = sadd.s32 %s90, 1
      %s92 = scalar_select %p89, %s90, %s91
      %p95 = pneg %p89
      %p96 = scmp.eq.s32.totalorder %s12, 1
      %p97 = por %p95, %p96
      %p98 = scmp.ne.s32.totalorder %s90, %s93
      %p99 = scmp.eq.s32.totalorder %s12, 0
      %p100 = por %p98, %p99
      %p101 = scmp.ne.s32.totalorder %s90, %s93
      %p102 = scmp.eq.s32.totalorder %s17, 1
      %p103 = por %p101, %p102
      %p104 = scmp.ne.s32.totalorder %s93, %s94
      %p105 = scmp.eq.s32.totalorder %s17, 0
      %p106 = por %p104, %p105
      %p107 = scmp.ne.s32.totalorder %s93, %s94
      %p108 = scmp.eq.s32.totalorder %s18, 1
      %p109 = por %p107, %p108
      %p111 = scmp.ne.s32.totalorder %s94, %s110
      %p112 = scmp.eq.s32.totalorder %s18, 0
      %p113 = por %p111, %p112
      %p114 = scmp.le.s32.totalorder 1, %s12
      %p115 = scmp.lt.s32.totalorder %s12, 3
      %p116 = pnand %p114, %p115
      %p117 = pneg %p116
      // Predicated region
      $region9: #{tpu_custom_call.1} parent=5 // pred_check
        _
      $region10: #{tpu_custom_call.1} parent=5 // pred_check_branch
        %119 = sbr.rel (%p116) target = $region12
      $region11: #{tpu_custom_call.1} parent=5 // pred_region
        %s120 = ssub.s32 %s12, 1
        // Predicated region
        $region13: #{tpu_custom_call.1} parent=11 // pred_check
          %p121 = pneg %p59
        $region14: #{tpu_custom_call.1} parent=11 // pred_check_branch
          %123 = sbr.rel (%p121) target = $region16
        $region15: #{tpu_custom_call.1} parent=11 // pred_region
          _
        $region16: #{tpu_custom_call.1} parent=11 // pred_fallthru
          _
        // Predicated region
        $region17: #{tpu_custom_call.1} parent=11 // pred_check
          %p124 = pneg %p80
        $region18: #{tpu_custom_call.1} parent=11 // pred_check_branch
          %126 = sbr.rel (%p124) target = $region20
        $region19: #{tpu_custom_call.1} parent=11 // pred_region
          _
        $region20: #{tpu_custom_call.1} parent=11 // pred_fallthru
          _
      $region12: #{tpu_custom_call.1} parent=5 // pred_fallthru
        _
      %p127 = scmp.lt.s32.totalorder %s12, 2
      // Predicated region
      $region21: #{tpu_custom_call.1} parent=5 // pred_check
        %p128 = pneg %p127
      $region22: #{tpu_custom_call.1} parent=5 // pred_check_branch
        %130 = sbr.rel (%p128) target = $region24
      $region23: #{tpu_custom_call.1} parent=5 // pred_region
        // Predicated region
        $region25: #{tpu_custom_call.1} parent=23 // pred_check
          %p131 = pneg %p32
        $region26: #{tpu_custom_call.1} parent=23 // pred_check_branch
          %133 = sbr.rel (%p131) target = $region28
        $region27: #{tpu_custom_call.1} parent=23 // pred_region
          %p134 = scmp.lt.s32.totalorder %s12, 1
          %s135 = scalar_select %p134, %s12, 1
          %s136 = smul.addr %s135, 8
          %s137 = smul.addr %s136, 4
          %s138 = scalar_lea.vmem %s0, %s137
        $region28: #{tpu_custom_call.1} parent=23 // pred_fallthru
          _
      $region24: #{tpu_custom_call.1} parent=5 // pred_fallthru
        _
      %p139 = scmp.le.s32.totalorder 1, %s12
      %p140 = scmp.lt.s32.totalorder %s12, 3
      %p141 = pnand %p139, %p140
      %p142 = pneg %p141
      // Predicated region
      $region29: #{tpu_custom_call.1} parent=5 // pred_check
        _
      $region30: #{tpu_custom_call.1} parent=5 // pred_check_branch
        %144 = sbr.rel (%p141) target = $region32
      $region31: #{tpu_custom_call.1} parent=5 // pred_region
        %s145 = ssub.s32 %s12, 1
        %p146 = scmp.lt.s32.totalorder %s17, 1
        %s147 = scalar_select %p146, %s17, 1
        %s148 = smul.addr %s147, 8
        %s149 = smul.addr %s148, 4
        %s150 = scalar_lea.vmem %s0, %s149
        %p151 = pneg %p38
        %p152 = pneg %p35
        %p153 = pneg %p59
        %p154 = pneg %p56
        %p155 = pneg %p80
        %p156 = pneg %p77
        %p157 = pneg %p106
        %p158 = pneg %p103
        %s159 = sand.u32 %s93, 1
        %s160 = scalar_lea.sflag [#allocation3], %s159
        %s161 = sand.u32 %s93, 1
        %s162 = smul.addr %s161, 32
        %s163 = scalar_lea.vmem [#allocation2], %s162
        %p164 = scmp.lt.s32.totalorder %s17, 1
        %s165 = scalar_select %p164, %s17, 1
        %s166 = smul.addr %s165, 8
        %s167 = smul.addr %s166, 4
        %s168 = scalar_lea.vmem %s0, %s167
        %v169 = vld [vmem:[%s168] sm:$0xff]
        %v170 = vld [vmem:[%s168 + $0x8] sm:$0xff]
        %v171 = vld [vmem:[%s168 + $0x10] sm:$0xff]
        %v172 = vld [vmem:[%s168 + $0x18] sm:$0xff]
        %v173 = vld [vmem:[%s1] sm:$0xff]
        %v174 = vld [vmem:[%s1 + $0x8] sm:$0xff]
        %179 = vst [vmem:[#allocation1] ss:$2 sm:$0xff] %v169
        %s180 = scalar_lea.vmem [#allocation1], 16
        %181 = vst [vmem:[%s180] ss:$2 sm:$0xff] %v170
        %s182 = scalar_lea.vmem [#allocation1], 32
        %183 = vst [vmem:[%s182] ss:$2 sm:$0xff] %v171
        %s184 = scalar_lea.vmem [#allocation1], 48
        %185 = vst [vmem:[%s184] ss:$2 sm:$0xff] %v172
        %v186 = vld.sshfl [vmem:[#allocation1] sm:$0xff pattern:$0x75316420]
        %v187 = vld.sshfl [vmem:[#allocation1 + $0x8] sm:$0xff pattern:$0x75316420]
        %v188 = vld.sshfl [vmem:[#allocation1 + $0x10] sm:$0xff pattern:$0x75316420]
        %v189 = vld.sshfl [vmem:[#allocation1 + $0x18] sm:$0xff pattern:$0x75316420]
        %v190 = vld.sshfl [vmem:[#allocation1 + $0x20] sm:$0xff pattern:$0x75316420]
        %v191 = vld.sshfl [vmem:[#allocation1 + $0x28] sm:$0xff pattern:$0x75316420]
        %v192 = vld.sshfl [vmem:[#allocation1 + $0x30] sm:$0xff pattern:$0x75316420]
        %v193 = vld.sshfl [vmem:[#allocation1 + $0x38] sm:$0xff pattern:$0x75316420]
        %vm194 = vcmask 31744
        %v196 = vsel %vm194, %v173, 0
        %v199 = vsel %vm194, %v174, 0
        %vm201 = vcmask 1043456
        %v202 = vsel %vm201, %v186, 0
        %v204 = vsel %vm201, %v187, 0
        %v206 = vsel %vm201, %v188, 0
        %v208 = vsel %vm201, %v189, 0
        %v210 = vsel %vm201, %v190, 0
        %v212 = vsel %vm201, %v191, 0
        %v214 = vsel %vm201, %v192, 0
        %v216 = vsel %vm201, %v193, 0
        %218 = vmatpush.msra.mxu0 0.0
        %219 = vmatpush.msra.mxu0 0.0
        %220 = vmatpush.msra.mxu0 0.0
        %221 = vmatpush.msra.mxu0 0.0
        %222 = vmatpush.msra.mxu0 0.0
        %223 = vmatpush.msra.mxu0 0.0
        %224 = vmatpush.msra.mxu0 0.0
        %225 = vmatpush.msra.mxu0 0.0
        %226 = vmatpush.msra.mxu0 0.0
        %227 = vmatpush.msra.mxu0 0.0
        %228 = vmatpush.msra.mxu0 0.0
        %229 = vmatpush.msra.mxu0 0.0
        %230 = vmatpush.msra.mxu0 0.0
        %231 = vmatpush.msra.mxu0 0.0
        %232 = vmatpush.msra.mxu0 0.0
        %233 = vmatpush.msra.mxu0 %v202
        %234 = vmatmul.f32.gmra.mxu0 %v196
        %v235 = vpop.f32.mrf.mxu0
        %v236 = vadd.f32 0.0, %v235
        %237 = vmatmul.f32.gmra.mxu0 %v199
        %v238 = vpop.f32.mrf.mxu0
        %v239 = vadd.f32 0.0, %v238
        %240 = vdwg.mxu0
        %241 = vmatpush.msra.mxu0 0.0
        %242 = vmatpush.msra.mxu0 0.0
        %243 = vmatpush.msra.mxu0 0.0
        %244 = vmatpush.msra.mxu0 0.0
        %245 = vmatpush.msra.mxu0 0.0
        %246 = vmatpush.msra.mxu0 0.0
        %247 = vmatpush.msra.mxu0 0.0
        %248 = vmatpush.msra.mxu0 0.0
        %249 = vmatpush.msra.mxu0 0.0
        %250 = vmatpush.msra.mxu0 0.0
        %251 = vmatpush.msra.mxu0 0.0
        %252 = vmatpush.msra.mxu0 0.0
        %253 = vmatpush.msra.mxu0 0.0
        %254 = vmatpush.msra.mxu0 0.0
        %255 = vmatpush.msra.mxu0 0.0
        %256 = vmatpush.msra.mxu0 %v204
        %257 = vmatmul.f32.gmra.mxu0 %v196
        %v258 = vpop.f32.mrf.mxu0
        %v259 = vadd.f32 0.0, %v258
        %260 = vmatmul.f32.gmra.mxu0 %v199
        %v261 = vpop.f32.mrf.mxu0
        %v262 = vadd.f32 0.0, %v261
        %263 = vdwg.mxu0
        %264 = vmatpush.msra.mxu0 0.0
        %265 = vmatpush.msra.mxu0 0.0
        %266 = vmatpush.msra.mxu0 0.0
        %267 = vmatpush.msra.mxu0 0.0
        %268 = vmatpush.msra.mxu0 0.0
        %269 = vmatpush.msra.mxu0 0.0
        %270 = vmatpush.msra.mxu0 0.0
        %271 = vmatpush.msra.mxu0 0.0
        %272 = vmatpush.msra.mxu0 0.0
        %273 = vmatpush.msra.mxu0 0.0
        %274 = vmatpush.msra.mxu0 0.0
        %275 = vmatpush.msra.mxu0 0.0
        %276 = vmatpush.msra.mxu0 0.0
        %277 = vmatpush.msra.mxu0 0.0
        %278 = vmatpush.msra.mxu0 0.0
        %279 = vmatpush.msra.mxu0 %v206
        %280 = vmatmul.f32.gmra.mxu0 %v196
        %v281 = vpop.f32.mrf.mxu0
        %v282 = vadd.f32 0.0, %v281
        %283 = vmatmul.f32.gmra.mxu0 %v199
        %v284 = vpop.f32.mrf.mxu0
        %v285 = vadd.f32 0.0, %v284
        %286 = vdwg.mxu0
        %287 = vmatpush.msra.mxu0 0.0
        %288 = vmatpush.msra.mxu0 0.0
        %289 = vmatpush.msra.mxu0 0.0
        %290 = vmatpush.msra.mxu0 0.0
        %291 = vmatpush.msra.mxu0 0.0
        %292 = vmatpush.msra.mxu0 0.0
        %293 = vmatpush.msra.mxu0 0.0
        %294 = vmatpush.msra.mxu0 0.0
        %295 = vmatpush.msra.mxu0 0.0
        %296 = vmatpush.msra.mxu0 0.0
        %297 = vmatpush.msra.mxu0 0.0
        %298 = vmatpush.msra.mxu0 0.0
        %299 = vmatpush.msra.mxu0 0.0
        %300 = vmatpush.msra.mxu0 0.0
        %301 = vmatpush.msra.mxu0 0.0
        %302 = vmatpush.msra.mxu0 %v208
        %303 = vmatmul.f32.gmra.mxu0 %v196
        %v304 = vpop.f32.mrf.mxu0
        %v305 = vadd.f32 0.0, %v304
        %306 = vmatmul.f32.gmra.mxu0 %v199
        %v307 = vpop.f32.mrf.mxu0
        %v308 = vadd.f32 0.0, %v307
        %309 = vdwg.mxu0
        %310 = vmatpush.msra.mxu0 0.0
        %311 = vmatpush.msra.mxu0 0.0
        %312 = vmatpush.msra.mxu0 0.0
        %313 = vmatpush.msra.mxu0 0.0
        %314 = vmatpush.msra.mxu0 0.0
        %315 = vmatpush.msra.mxu0 0.0
        %316 = vmatpush.msra.mxu0 0.0
        %317 = vmatpush.msra.mxu0 0.0
        %318 = vmatpush.msra.mxu0 0.0
        %319 = vmatpush.msra.mxu0 0.0
        %320 = vmatpush.msra.mxu0 0.0
        %321 = vmatpush.msra.mxu0 0.0
        %322 = vmatpush.msra.mxu0 0.0
        %323 = vmatpush.msra.mxu0 0.0
        %324 = vmatpush.msra.mxu0 0.0
        %325 = vmatpush.msra.mxu0 %v210
        %326 = vmatmul.f32.gmra.mxu0 %v196
        %v327 = vpop.f32.mrf.mxu0
        %v328 = vadd.f32 0.0, %v327
        %329 = vmatmul.f32.gmra.mxu0 %v199
        %v330 = vpop.f32.mrf.mxu0
        %v331 = vadd.f32 0.0, %v330
        %332 = vdwg.mxu0
        %333 = vmatpush.msra.mxu0 0.0
        %334 = vmatpush.msra.mxu0 0.0
        %335 = vmatpush.msra.mxu0 0.0
        %336 = vmatpush.msra.mxu0 0.0
        %337 = vmatpush.msra.mxu0 0.0
        %338 = vmatpush.msra.mxu0 0.0
        %339 = vmatpush.msra.mxu0 0.0
        %340 = vmatpush.msra.mxu0 0.0
        %341 = vmatpush.msra.mxu0 0.0
        %342 = vmatpush.msra.mxu0 0.0
        %343 = vmatpush.msra.mxu0 0.0
        %344 = vmatpush.msra.mxu0 0.0
        %345 = vmatpush.msra.mxu0 0.0
        %346 = vmatpush.msra.mxu0 0.0
        %347 = vmatpush.msra.mxu0 0.0
        %348 = vmatpush.msra.mxu0 %v212
        %349 = vmatmul.f32.gmra.mxu0 %v196
        %v350 = vpop.f32.mrf.mxu0
        %v351 = vadd.f32 0.0, %v350
        %352 = vmatmul.f32.gmra.mxu0 %v199
        %v353 = vpop.f32.mrf.mxu0
        %v354 = vadd.f32 0.0, %v353
        %355 = vdwg.mxu0
        %356 = vmatpush.msra.mxu0 0.0
        %357 = vmatpush.msra.mxu0 0.0
        %358 = vmatpush.msra.mxu0 0.0
        %359 = vmatpush.msra.mxu0 0.0
        %360 = vmatpush.msra.mxu0 0.0
        %361 = vmatpush.msra.mxu0 0.0
        %362 = vmatpush.msra.mxu0 0.0
        %363 = vmatpush.msra.mxu0 0.0
        %364 = vmatpush.msra.mxu0 0.0
        %365 = vmatpush.msra.mxu0 0.0
        %366 = vmatpush.msra.mxu0 0.0
        %367 = vmatpush.msra.mxu0 0.0
        %368 = vmatpush.msra.mxu0 0.0
        %369 = vmatpush.msra.mxu0 0.0
        %370 = vmatpush.msra.mxu0 0.0
        %371 = vmatpush.msra.mxu0 %v214
        %372 = vmatmul.f32.gmra.mxu0 %v196
        %v373 = vpop.f32.mrf.mxu0
        %v374 = vadd.f32 0.0, %v373
        %375 = vmatmul.f32.gmra.mxu0 %v199
        %v376 = vpop.f32.mrf.mxu0
        %v377 = vadd.f32 0.0, %v376
        %378 = vdwg.mxu0
        %379 = vmatpush.msra.mxu0 0.0
        %380 = vmatpush.msra.mxu0 0.0
        %381 = vmatpush.msra.mxu0 0.0
        %382 = vmatpush.msra.mxu0 0.0
        %383 = vmatpush.msra.mxu0 0.0
        %384 = vmatpush.msra.mxu0 0.0
        %385 = vmatpush.msra.mxu0 0.0
        %386 = vmatpush.msra.mxu0 0.0
        %387 = vmatpush.msra.mxu0 0.0
        %388 = vmatpush.msra.mxu0 0.0
        %389 = vmatpush.msra.mxu0 0.0
        %390 = vmatpush.msra.mxu0 0.0
        %391 = vmatpush.msra.mxu0 0.0
        %392 = vmatpush.msra.mxu0 0.0
        %393 = vmatpush.msra.mxu0 0.0
        %394 = vmatpush.msra.mxu0 %v216
        %395 = vmatmul.f32.gmra.mxu0 %v196
        %v396 = vpop.f32.mrf.mxu0
        %v397 = vadd.f32 0.0, %v396
        %398 = vmatmul.f32.gmra.mxu0 %v199
        %v399 = vpop.f32.mrf.mxu0
        %v400 = vadd.f32 0.0, %v399
        %401 = vdwg.mxu0
        %v402 = vadd.f32 %v236, %v259
        %v403 = vadd.f32 %v402, %v282
        %v404 = vadd.f32 %v403, %v305
        %v405 = vadd.f32 %v404, %v328
        %v406 = vadd.f32 %v405, %v351
        %v407 = vadd.f32 %v406, %v374
        %v408 = vadd.f32 %v407, %v397
        %409 = vadd.xlane.f32.xlu0 %v408
        %v410 = vpop.xlane.xlu0 %409
        %v411 = vadd.f32 %v239, %v262
        %v412 = vadd.f32 %v411, %v285
        %v413 = vadd.f32 %v412, %v308
        %v414 = vadd.f32 %v413, %v331
        %v415 = vadd.f32 %v414, %v354
        %v416 = vadd.f32 %v415, %v377
        %v417 = vadd.f32 %v416, %v400
        %418 = vadd.xlane.f32.xlu0 %v417
        %v419 = vpop.xlane.xlu0 %418
        %v420 = vrcp.pop 1024.0
        %v421 = vmul.f32 1024.0, %v420
        %v422 = vsub.f32 1.0, %v421
        %v423 = vmul.f32 %v420, %v422
        %v424 = vadd.f32 %v420, %v423
        %vm425 = vweird.f32 %v420
        %v426 = vsel %vm425, %v420, %v424
        %v427 = vmul.f32 %v410, %v426
        %v428 = vmul.f32 %v419, %v426
        %v429 = vsub.f32 %v236, %v427
        %v430 = vsub.f32 %v259, %v427
        %v431 = vsub.f32 %v282, %v427
        %v432 = vsub.f32 %v305, %v427
        %v433 = vsub.f32 %v328, %v427
        %v434 = vsub.f32 %v351, %v427
        %v435 = vsub.f32 %v374, %v427
        %v436 = vsub.f32 %v397, %v427
        %v437 = vsub.f32 %v239, %v428
        %v438 = vsub.f32 %v262, %v428
        %v439 = vsub.f32 %v285, %v428
        %v440 = vsub.f32 %v308, %v428
        %v441 = vsub.f32 %v331, %v428
        %v442 = vsub.f32 %v354, %v428
        %v443 = vsub.f32 %v377, %v428
        %v444 = vsub.f32 %v400, %v428
        %v445 = vmul.f32 %v429, %v429
        %v446 = vmul.f32 %v430, %v430
        %v447 = vmul.f32 %v431, %v431
        %v448 = vmul.f32 %v432, %v432
        %v449 = vmul.f32 %v433, %v433
        %v450 = vmul.f32 %v434, %v434
        %v451 = vmul.f32 %v435, %v435
        %v452 = vmul.f32 %v436, %v436
        %v453 = vmul.f32 %v437, %v437
        %v454 = vmul.f32 %v438, %v438
        %v455 = vmul.f32 %v439, %v439
        %v456 = vmul.f32 %v440, %v440
        %v457 = vmul.f32 %v441, %v441
        %v458 = vmul.f32 %v442, %v442
        %v459 = vmul.f32 %v443, %v443
        %v460 = vmul.f32 %v444, %v444
        %v461 = vadd.f32 %v445, %v446
        %v462 = vadd.f32 %v461, %v447
        %v463 = vadd.f32 %v462, %v448
        %v464 = vadd.f32 %v463, %v449
        %v465 = vadd.f32 %v464, %v450
        %v466 = vadd.f32 %v465, %v451
        %v467 = vadd.f32 %v466, %v452
        %468 = vadd.xlane.f32.xlu0 %v467
        %v469 = vpop.xlane.xlu0 %468
        %v470 = vadd.f32 %v453, %v454
        %v471 = vadd.f32 %v470, %v455
        %v472 = vadd.f32 %v471, %v456
        %v473 = vadd.f32 %v472, %v457
        %v474 = vadd.f32 %v473, %v458
        %v475 = vadd.f32 %v474, %v459
        %v476 = vadd.f32 %v475, %v460
        %477 = vadd.xlane.f32.xlu0 %v476
        %v478 = vpop.xlane.xlu0 %477
        %v479 = vmul.f32 %v469, %v426
        %v480 = vmul.f32 %v478, %v426
        %v481 = vadd.f32 %v479, 1e-05
        %v482 = vadd.f32 %v480, 1e-05
        %v483 = vrsqrt.pop %v481
        %v484 = vmul.f32 %v483, %v481
        %v485 = vmul.f32 %v484, %v483
        %v486 = vmul.f32 0.5, %v485
        %v487 = vsub.f32 1.5, %v486
        %v488 = vmul.f32 %v483, %v487
        %vm489 = vweird.f32 %v481
        %vm490 = vweird.f32 %v483
        %vm491 = vmor %vm489, %vm490
        %v492 = vsel %vm491, %v483, %v488
        %v493 = vrsqrt.pop %v482
        %v494 = vmul.f32 %v493, %v482
        %v495 = vmul.f32 %v494, %v493
        %v496 = vmul.f32 0.5, %v495
        %v497 = vsub.f32 1.5, %v496
        %v498 = vmul.f32 %v493, %v497
        %vm499 = vweird.f32 %v482
        %vm500 = vweird.f32 %v493
        %vm501 = vmor %vm499, %vm500
        %v502 = vsel %vm501, %v493, %v498
        %v503 = vmul.f32 %v429, %v492
        %v504 = vmul.f32 %v430, %v492
        %v505 = vmul.f32 %v431, %v492
        %v506 = vmul.f32 %v432, %v492
        %v507 = vmul.f32 %v433, %v492
        %v508 = vmul.f32 %v434, %v492
        %v509 = vmul.f32 %v435, %v492
        %v510 = vmul.f32 %v436, %v492
        %v511 = vmul.f32 %v437, %v502
        %v512 = vmul.f32 %v438, %v502
        %v513 = vmul.f32 %v439, %v502
        %v514 = vmul.f32 %v440, %v502
        %v515 = vmul.f32 %v441, %v502
        %v516 = vmul.f32 %v442, %v502
        %v517 = vmul.f32 %v443, %v502
        %v518 = vmul.f32 %v444, %v502
        %v519 = vmax.f32 %v503, 0.0
        %v520 = vmax.f32 %v504, 0.0
        %v521 = vmax.f32 %v505, 0.0
        %v522 = vmax.f32 %v506, 0.0
        %v523 = vmax.f32 %v507, 0.0
        %v524 = vmax.f32 %v508, 0.0
        %v525 = vmax.f32 %v509, 0.0
        %v526 = vmax.f32 %v510, 0.0
        %v527 = vmax.f32 %v511, 0.0
        %v528 = vmax.f32 %v512, 0.0
        %v529 = vmax.f32 %v513, 0.0
        %v530 = vmax.f32 %v514, 0.0
        %v531 = vmax.f32 %v515, 0.0
        %v532 = vmax.f32 %v516, 0.0
        %v533 = vmax.f32 %v517, 0.0
        %v534 = vmax.f32 %v518, 0.0
        %v535 = vld [vmem:[%s2] sm:$0xff]
        %v536 = vld [vmem:[%s2 + $0x8] sm:$0xff]
        %v537 = vld [vmem:[%s2 + $0x10] sm:$0xff]
        %v538 = vld [vmem:[%s2 + $0x18] sm:$0xff]
        %vm539 = vcmask 130048
        %v541 = vsel %vm539, %v535, 0
        %v544 = vsel %vm539, %v536, 0
        %v547 = vsel %vm539, %v537, 0
        %v550 = vsel %vm539, %v538, 0
        %552 = vmatpush.msra.mxu0 0.0
        %553 = vmatpush.msra.mxu0 0.0
        %554 = vmatpush.msra.mxu0 0.0
        %555 = vmatpush.msra.mxu0 0.0
        %556 = vmatpush.msra.mxu0 0.0
        %557 = vmatpush.msra.mxu0 0.0
        %558 = vmatpush.msra.mxu0 0.0
        %559 = vmatpush.msra.mxu0 0.0
        %560 = vmatpush.msra.mxu0 0.0
        %561 = vmatpush.msra.mxu0 0.0
        %562 = vmatpush.msra.mxu0 0.0
        %563 = vmatpush.msra.mxu0 0.0
        %564 = vmatpush.msra.mxu0 0.0
        %565 = vmatpush.msra.mxu0 0.0
        %566 = vmatpush.msra.mxu0 %v527
        %567 = vmatpush.msra.mxu0 %v519
        %568 = vmatmul.f32.gmra.mxu0 %v541
        %v569 = vpop.f32.mrf.mxu0
        %v570 = vadd.f32 0.0, %v569
        %571 = vmatmul.f32.gmra.mxu0 %v544
        %v572 = vpop.f32.mrf.mxu0
        %v573 = vadd.f32 0.0, %v572
        %574 = vmatmul.f32.gmra.mxu0 %v547
        %v575 = vpop.f32.mrf.mxu0
        %v576 = vadd.f32 0.0, %v575
        %577 = vmatmul.f32.gmra.mxu0 %v550
        %v578 = vpop.f32.mrf.mxu0
        %v579 = vadd.f32 0.0, %v578
        %580 = vdwg.mxu0
        %581 = vmatpush.msra.mxu0 0.0
        %582 = vmatpush.msra.mxu0 0.0
        %583 = vmatpush.msra.mxu0 0.0
        %584 = vmatpush.msra.mxu0 0.0
        %585 = vmatpush.msra.mxu0 0.0
        %586 = vmatpush.msra.mxu0 0.0
        %587 = vmatpush.msra.mxu0 0.0
        %588 = vmatpush.msra.mxu0 0.0
        %589 = vmatpush.msra.mxu0 0.0
        %590 = vmatpush.msra.mxu0 0.0
        %591 = vmatpush.msra.mxu0 0.0
        %592 = vmatpush.msra.mxu0 0.0
        %593 = vmatpush.msra.mxu0 0.0
        %594 = vmatpush.msra.mxu0 0.0
        %595 = vmatpush.msra.mxu0 %v528
        %596 = vmatpush.msra.mxu0 %v520
        %597 = vmatmul.f32.gmra.mxu0 %v541
        %v598 = vpop.f32.mrf.mxu0
        %v599 = vadd.f32 0.0, %v598
        %600 = vmatmul.f32.gmra.mxu0 %v544
        %v601 = vpop.f32.mrf.mxu0
        %v602 = vadd.f32 0.0, %v601
        %603 = vmatmul.f32.gmra.mxu0 %v547
        %v604 = vpop.f32.mrf.mxu0
        %v605 = vadd.f32 0.0, %v604
        %606 = vmatmul.f32.gmra.mxu0 %v550
        %v607 = vpop.f32.mrf.mxu0
        %v608 = vadd.f32 0.0, %v607
        %609 = vdwg.mxu0
        %610 = vmatpush.msra.mxu0 0.0
        %611 = vmatpush.msra.mxu0 0.0
        %612 = vmatpush.msra.mxu0 0.0
        %613 = vmatpush.msra.mxu0 0.0
        %614 = vmatpush.msra.mxu0 0.0
        %615 = vmatpush.msra.mxu0 0.0
        %616 = vmatpush.msra.mxu0 0.0
        %617 = vmatpush.msra.mxu0 0.0
        %618 = vmatpush.msra.mxu0 0.0
        %619 = vmatpush.msra.mxu0 0.0
        %620 = vmatpush.msra.mxu0 0.0
        %621 = vmatpush.msra.mxu0 0.0
        %622 = vmatpush.msra.mxu0 0.0
        %623 = vmatpush.msra.mxu0 0.0
        %624 = vmatpush.msra.mxu0 %v529
        %625 = vmatpush.msra.mxu0 %v521
        %626 = vmatmul.f32.gmra.mxu0 %v541
        %v627 = vpop.f32.mrf.mxu0
        %v628 = vadd.f32 0.0, %v627
        %629 = vmatmul.f32.gmra.mxu0 %v544
        %v630 = vpop.f32.mrf.mxu0
        %v631 = vadd.f32 0.0, %v630
        %632 = vmatmul.f32.gmra.mxu0 %v547
        %v633 = vpop.f32.mrf.mxu0
        %v634 = vadd.f32 0.0, %v633
        %635 = vmatmul.f32.gmra.mxu0 %v550
        %v636 = vpop.f32.mrf.mxu0
        %v637 = vadd.f32 0.0, %v636
        %638 = vdwg.mxu0
        %639 = vmatpush.msra.mxu0 0.0
        %640 = vmatpush.msra.mxu0 0.0
        %641 = vmatpush.msra.mxu0 0.0
        %642 = vmatpush.msra.mxu0 0.0
        %643 = vmatpush.msra.mxu0 0.0
        %644 = vmatpush.msra.mxu0 0.0
        %645 = vmatpush.msra.mxu0 0.0
        %646 = vmatpush.msra.mxu0 0.0
        %647 = vmatpush.msra.mxu0 0.0
        %648 = vmatpush.msra.mxu0 0.0
        %649 = vmatpush.msra.mxu0 0.0
        %650 = vmatpush.msra.mxu0 0.0
        %651 = vmatpush.msra.mxu0 0.0
        %652 = vmatpush.msra.mxu0 0.0
        %653 = vmatpush.msra.mxu0 %v530
        %654 = vmatpush.msra.mxu0 %v522
        %655 = vmatmul.f32.gmra.mxu0 %v541
        %v656 = vpop.f32.mrf.mxu0
        %v657 = vadd.f32 0.0, %v656
        %658 = vmatmul.f32.gmra.mxu0 %v544
        %v659 = vpop.f32.mrf.mxu0
        %v660 = vadd.f32 0.0, %v659
        %661 = vmatmul.f32.gmra.mxu0 %v547
        %v662 = vpop.f32.mrf.mxu0
        %v663 = vadd.f32 0.0, %v662
        %664 = vmatmul.f32.gmra.mxu0 %v550
        %v665 = vpop.f32.mrf.mxu0
        %v666 = vadd.f32 0.0, %v665
        %667 = vdwg.mxu0
        %668 = vmatpush.msra.mxu0 0.0
        %669 = vmatpush.msra.mxu0 0.0
        %670 = vmatpush.msra.mxu0 0.0
        %671 = vmatpush.msra.mxu0 0.0
        %672 = vmatpush.msra.mxu0 0.0
        %673 = vmatpush.msra.mxu0 0.0
        %674 = vmatpush.msra.mxu0 0.0
        %675 = vmatpush.msra.mxu0 0.0
        %676 = vmatpush.msra.mxu0 0.0
        %677 = vmatpush.msra.mxu0 0.0
        %678 = vmatpush.msra.mxu0 0.0
        %679 = vmatpush.msra.mxu0 0.0
        %680 = vmatpush.msra.mxu0 0.0
        %681 = vmatpush.msra.mxu0 0.0
        %682 = vmatpush.msra.mxu0 %v531
        %683 = vmatpush.msra.mxu0 %v523
        %684 = vmatmul.f32.gmra.mxu0 %v541
        %v685 = vpop.f32.mrf.mxu0
        %v686 = vadd.f32 0.0, %v685
        %687 = vmatmul.f32.gmra.mxu0 %v544
        %v688 = vpop.f32.mrf.mxu0
        %v689 = vadd.f32 0.0, %v688
        %690 = vmatmul.f32.gmra.mxu0 %v547
        %v691 = vpop.f32.mrf.mxu0
        %v692 = vadd.f32 0.0, %v691
        %693 = vmatmul.f32.gmra.mxu0 %v550
        %v694 = vpop.f32.mrf.mxu0
        %v695 = vadd.f32 0.0, %v694
        %696 = vdwg.mxu0
        %697 = vmatpush.msra.mxu0 0.0
        %698 = vmatpush.msra.mxu0 0.0
        %699 = vmatpush.msra.mxu0 0.0
        %700 = vmatpush.msra.mxu0 0.0
        %701 = vmatpush.msra.mxu0 0.0
        %702 = vmatpush.msra.mxu0 0.0
        %703 = vmatpush.msra.mxu0 0.0
        %704 = vmatpush.msra.mxu0 0.0
        %705 = vmatpush.msra.mxu0 0.0
        %706 = vmatpush.msra.mxu0 0.0
        %707 = vmatpush.msra.mxu0 0.0
        %708 = vmatpush.msra.mxu0 0.0
        %709 = vmatpush.msra.mxu0 0.0
        %710 = vmatpush.msra.mxu0 0.0
        %711 = vmatpush.msra.mxu0 %v532
        %712 = vmatpush.msra.mxu0 %v524
        %713 = vmatmul.f32.gmra.mxu0 %v541
        %v714 = vpop.f32.mrf.mxu0
        %v715 = vadd.f32 0.0, %v714
        %716 = vmatmul.f32.gmra.mxu0 %v544
        %v717 = vpop.f32.mrf.mxu0
        %v718 = vadd.f32 0.0, %v717
        %719 = vmatmul.f32.gmra.mxu0 %v547
        %v720 = vpop.f32.mrf.mxu0
        %v721 = vadd.f32 0.0, %v720
        %722 = vmatmul.f32.gmra.mxu0 %v550
        %v723 = vpop.f32.mrf.mxu0
        %v724 = vadd.f32 0.0, %v723
        %725 = vdwg.mxu0
        %726 = vmatpush.msra.mxu0 0.0
        %727 = vmatpush.msra.mxu0 0.0
        %728 = vmatpush.msra.mxu0 0.0
        %729 = vmatpush.msra.mxu0 0.0
        %730 = vmatpush.msra.mxu0 0.0
        %731 = vmatpush.msra.mxu0 0.0
        %732 = vmatpush.msra.mxu0 0.0
        %733 = vmatpush.msra.mxu0 0.0
        %734 = vmatpush.msra.mxu0 0.0
        %735 = vmatpush.msra.mxu0 0.0
        %736 = vmatpush.msra.mxu0 0.0
        %737 = vmatpush.msra.mxu0 0.0
        %738 = vmatpush.msra.mxu0 0.0
        %739 = vmatpush.msra.mxu0 0.0
        %740 = vmatpush.msra.mxu0 %v533
        %741 = vmatpush.msra.mxu0 %v525
        %742 = vmatmul.f32.gmra.mxu0 %v541
        %v743 = vpop.f32.mrf.mxu0
        %v744 = vadd.f32 0.0, %v743
        %745 = vmatmul.f32.gmra.mxu0 %v544
        %v746 = vpop.f32.mrf.mxu0
        %v747 = vadd.f32 0.0, %v746
        %748 = vmatmul.f32.gmra.mxu0 %v547
        %v749 = vpop.f32.mrf.mxu0
        %v750 = vadd.f32 0.0, %v749
        %751 = vmatmul.f32.gmra.mxu0 %v550
        %v752 = vpop.f32.mrf.mxu0
        %v753 = vadd.f32 0.0, %v752
        %754 = vdwg.mxu0
        %755 = vmatpush.msra.mxu0 0.0
        %756 = vmatpush.msra.mxu0 0.0
        %757 = vmatpush.msra.mxu0 0.0
        %758 = vmatpush.msra.mxu0 0.0
        %759 = vmatpush.msra.mxu0 0.0
        %760 = vmatpush.msra.mxu0 0.0
        %761 = vmatpush.msra.mxu0 0.0
        %762 = vmatpush.msra.mxu0 0.0
        %763 = vmatpush.msra.mxu0 0.0
        %764 = vmatpush.msra.mxu0 0.0
        %765 = vmatpush.msra.mxu0 0.0
        %766 = vmatpush.msra.mxu0 0.0
        %767 = vmatpush.msra.mxu0 0.0
        %768 = vmatpush.msra.mxu0 0.0
        %769 = vmatpush.msra.mxu0 %v534
        %770 = vmatpush.msra.mxu0 %v526
        %771 = vmatmul.f32.gmra.mxu0 %v541
        %v772 = vpop.f32.mrf.mxu0
        %v773 = vadd.f32 0.0, %v772
        %774 = vmatmul.f32.gmra.mxu0 %v544
        %v775 = vpop.f32.mrf.mxu0
        %v776 = vadd.f32 0.0, %v775
        %777 = vmatmul.f32.gmra.mxu0 %v547
        %v778 = vpop.f32.mrf.mxu0
        %v779 = vadd.f32 0.0, %v778
        %780 = vmatmul.f32.gmra.mxu0 %v550
        %v781 = vpop.f32.mrf.mxu0
        %v782 = vadd.f32 0.0, %v781
        %783 = vdwg.mxu0
        %v784 = vadd.f32 %v570, %v599
        %v785 = vadd.f32 %v784, %v628
        %v786 = vadd.f32 %v785, %v657
        %v787 = vadd.f32 %v786, %v686
        %v788 = vadd.f32 %v787, %v715
        %v789 = vadd.f32 %v788, %v744
        %v790 = vadd.f32 %v789, %v773
        %791 = vadd.xlane.f32.xlu0 %v790
        %v792 = vpop.xlane.xlu0 %791
        %v793 = vadd.f32 %v573, %v602
        %v794 = vadd.f32 %v793, %v631
        %v795 = vadd.f32 %v794, %v660
        %v796 = vadd.f32 %v795, %v689
        %v797 = vadd.f32 %v796, %v718
        %v798 = vadd.f32 %v797, %v747
        %v799 = vadd.f32 %v798, %v776
        %800 = vadd.xlane.f32.xlu0 %v799
        %v801 = vpop.xlane.xlu0 %800
        %v802 = vadd.f32 %v576, %v605
        %v803 = vadd.f32 %v802, %v634
        %v804 = vadd.f32 %v803, %v663
        %v805 = vadd.f32 %v804, %v692
        %v806 = vadd.f32 %v805, %v721
        %v807 = vadd.f32 %v806, %v750
        %v808 = vadd.f32 %v807, %v779
        %809 = vadd.xlane.f32.xlu0 %v808
        %v810 = vpop.xlane.xlu0 %809
        %v811 = vadd.f32 %v579, %v608
        %v812 = vadd.f32 %v811, %v637
        %v813 = vadd.f32 %v812, %v666
        %v814 = vadd.f32 %v813, %v695
        %v815 = vadd.f32 %v814, %v724
        %v816 = vadd.f32 %v815, %v753
        %v817 = vadd.f32 %v816, %v782
        %818 = vadd.xlane.f32.xlu0 %v817
        %v819 = vpop.xlane.xlu0 %818
        %v820 = vmul.f32 %v792, %v426
        %v821 = vmul.f32 %v801, %v426
        %v822 = vmul.f32 %v810, %v426
        %v823 = vmul.f32 %v819, %v426
        %v824 = vsub.f32 %v570, %v820
        %v825 = vsub.f32 %v599, %v820
        %v826 = vsub.f32 %v628, %v820
        %v827 = vsub.f32 %v657, %v820
        %v828 = vsub.f32 %v686, %v820
        %v829 = vsub.f32 %v715, %v820
        %v830 = vsub.f32 %v744, %v820
        %v831 = vsub.f32 %v773, %v820
        %v832 = vsub.f32 %v573, %v821
        %v833 = vsub.f32 %v602, %v821
        %v834 = vsub.f32 %v631, %v821
        %v835 = vsub.f32 %v660, %v821
        %v836 = vsub.f32 %v689, %v821
        %v837 = vsub.f32 %v718, %v821
        %v838 = vsub.f32 %v747, %v821
        %v839 = vsub.f32 %v776, %v821
        %v840 = vsub.f32 %v576, %v822
        %v841 = vsub.f32 %v605, %v822
        %v842 = vsub.f32 %v634, %v822
        %v843 = vsub.f32 %v663, %v822
        %v844 = vsub.f32 %v692, %v822
        %v845 = vsub.f32 %v721, %v822
        %v846 = vsub.f32 %v750, %v822
        %v847 = vsub.f32 %v779, %v822
        %v848 = vsub.f32 %v579, %v823
        %v849 = vsub.f32 %v608, %v823
        %v850 = vsub.f32 %v637, %v823
        %v851 = vsub.f32 %v666, %v823
        %v852 = vsub.f32 %v695, %v823
        %v853 = vsub.f32 %v724, %v823
        %v854 = vsub.f32 %v753, %v823
        %v855 = vsub.f32 %v782, %v823
        %v856 = vmul.f32 %v824, %v824
        %v857 = vmul.f32 %v825, %v825
        %v858 = vmul.f32 %v826, %v826
        %v859 = vmul.f32 %v827, %v827
        %v860 = vmul.f32 %v828, %v828
        %v861 = vmul.f32 %v829, %v829
        %v862 = vmul.f32 %v830, %v830
        %v863 = vmul.f32 %v831, %v831
        %v864 = vmul.f32 %v832, %v832
        %v865 = vmul.f32 %v833, %v833
        %v866 = vmul.f32 %v834, %v834
        %v867 = vmul.f32 %v835, %v835
        %v868 = vmul.f32 %v836, %v836
        %v869 = vmul.f32 %v837, %v837
        %v870 = vmul.f32 %v838, %v838
        %v871 = vmul.f32 %v839, %v839
        %v872 = vmul.f32 %v840, %v840
        %v873 = vmul.f32 %v841, %v841
        %v874 = vmul.f32 %v842, %v842
        %v875 = vmul.f32 %v843, %v843
        %v876 = vmul.f32 %v844, %v844
        %v877 = vmul.f32 %v845, %v845
        %v878 = vmul.f32 %v846, %v846
        %v879 = vmul.f32 %v847, %v847
        %v880 = vmul.f32 %v848, %v848
        %v881 = vmul.f32 %v849, %v849
        %v882 = vmul.f32 %v850, %v850
        %v883 = vmul.f32 %v851, %v851
        %v884 = vmul.f32 %v852, %v852
        %v885 = vmul.f32 %v853, %v853
        %v886 = vmul.f32 %v854, %v854
        %v887 = vmul.f32 %v855, %v855
        %v888 = vadd.f32 %v856, %v857
        %v889 = vadd.f32 %v888, %v858
        %v890 = vadd.f32 %v889, %v859
        %v891 = vadd.f32 %v890, %v860
        %v892 = vadd.f32 %v891, %v861
        %v893 = vadd.f32 %v892, %v862
        %v894 = vadd.f32 %v893, %v863
        %895 = vadd.xlane.f32.xlu0 %v894
        %v896 = vpop.xlane.xlu0 %895
        %v897 = vadd.f32 %v864, %v865
        %v898 = vadd.f32 %v897, %v866
        %v899 = vadd.f32 %v898, %v867
        %v900 = vadd.f32 %v899, %v868
        %v901 = vadd.f32 %v900, %v869
        %v902 = vadd.f32 %v901, %v870
        %v903 = vadd.f32 %v902, %v871
        %904 = vadd.xlane.f32.xlu0 %v903
        %v905 = vpop.xlane.xlu0 %904
        %v906 = vadd.f32 %v872, %v873
        %v907 = vadd.f32 %v906, %v874
        %v908 = vadd.f32 %v907, %v875
        %v909 = vadd.f32 %v908, %v876
        %v910 = vadd.f32 %v909, %v877
        %v911 = vadd.f32 %v910, %v878
        %v912 = vadd.f32 %v911, %v879
        %913 = vadd.xlane.f32.xlu0 %v912
        %v914 = vpop.xlane.xlu0 %913
        %v915 = vadd.f32 %v880, %v881
        %v916 = vadd.f32 %v915, %v882
        %v917 = vadd.f32 %v916, %v883
        %v918 = vadd.f32 %v917, %v884
        %v919 = vadd.f32 %v918, %v885
        %v920 = vadd.f32 %v919, %v886
        %v921 = vadd.f32 %v920, %v887
        %922 = vadd.xlane.f32.xlu0 %v921
        %v923 = vpop.xlane.xlu0 %922
        %v924 = vmul.f32 %v896, %v426
        %v925 = vmul.f32 %v905, %v426
        %v926 = vmul.f32 %v914, %v426
        %v927 = vmul.f32 %v923, %v426
        %v928 = vadd.f32 %v924, 1e-05
        %v929 = vadd.f32 %v925, 1e-05
        %v930 = vadd.f32 %v926, 1e-05
        %v931 = vadd.f32 %v927, 1e-05
        %v932 = vrsqrt.pop %v928
        %v933 = vmul.f32 %v932, %v928
        %v934 = vmul.f32 %v933, %v932
        %v935 = vmul.f32 0.5, %v934
        %v936 = vsub.f32 1.5, %v935
        %v937 = vmul.f32 %v932, %v936
        %vm938 = vweird.f32 %v928
        %vm939 = vweird.f32 %v932
        %vm940 = vmor %vm938, %vm939
        %v941 = vsel %vm940, %v932, %v937
        %v942 = vrsqrt.pop %v929
        %v943 = vmul.f32 %v942, %v929
        %v944 = vmul.f32 %v943, %v942
        %v945 = vmul.f32 0.5, %v944
        %v946 = vsub.f32 1.5, %v945
        %v947 = vmul.f32 %v942, %v946
        %vm948 = vweird.f32 %v929
        %vm949 = vweird.f32 %v942
        %vm950 = vmor %vm948, %vm949
        %v951 = vsel %vm950, %v942, %v947
        %v952 = vrsqrt.pop %v930
        %v953 = vmul.f32 %v952, %v930
        %v954 = vmul.f32 %v953, %v952
        %v955 = vmul.f32 0.5, %v954
        %v956 = vsub.f32 1.5, %v955
        %v957 = vmul.f32 %v952, %v956
        %vm958 = vweird.f32 %v930
        %vm959 = vweird.f32 %v952
        %vm960 = vmor %vm958, %vm959
        %v961 = vsel %vm960, %v952, %v957
        %v962 = vrsqrt.pop %v931
        %v963 = vmul.f32 %v962, %v931
        %v964 = vmul.f32 %v963, %v962
        %v965 = vmul.f32 0.5, %v964
        %v966 = vsub.f32 1.5, %v965
        %v967 = vmul.f32 %v962, %v966
        %vm968 = vweird.f32 %v931
        %vm969 = vweird.f32 %v962
        %vm970 = vmor %vm968, %vm969
        %v971 = vsel %vm970, %v962, %v967
        %v972 = vmul.f32 %v824, %v941
        %v973 = vmul.f32 %v825, %v941
        %v974 = vmul.f32 %v826, %v941
        %v975 = vmul.f32 %v827, %v941
        %v976 = vmul.f32 %v828, %v941
        %v977 = vmul.f32 %v829, %v941
        %v978 = vmul.f32 %v830, %v941
        %v979 = vmul.f32 %v831, %v941
        %v980 = vmul.f32 %v832, %v951
        %v981 = vmul.f32 %v833, %v951
        %v982 = vmul.f32 %v834, %v951
        %v983 = vmul.f32 %v835, %v951
        %v984 = vmul.f32 %v836, %v951
        %v985 = vmul.f32 %v837, %v951
        %v986 = vmul.f32 %v838, %v951
        %v987 = vmul.f32 %v839, %v951
        %v988 = vmul.f32 %v840, %v961
        %v989 = vmul.f32 %v841, %v961
        %v990 = vmul.f32 %v842, %v961
        %v991 = vmul.f32 %v843, %v961
        %v992 = vmul.f32 %v844, %v961
        %v993 = vmul.f32 %v845, %v961
        %v994 = vmul.f32 %v846, %v961
        %v995 = vmul.f32 %v847, %v961
        %v996 = vmul.f32 %v848, %v971
        %v997 = vmul.f32 %v849, %v971
        %v998 = vmul.f32 %v850, %v971
        %v999 = vmul.f32 %v851, %v971
        %v1000 = vmul.f32 %v852, %v971
        %v1001 = vmul.f32 %v853, %v971
        %v1002 = vmul.f32 %v854, %v971
        %v1003 = vmul.f32 %v855, %v971
        %v1004 = vmax.f32 %v972, 0.0
        %v1005 = vmax.f32 %v973, 0.0
        %v1006 = vmax.f32 %v974, 0.0
        %v1007 = vmax.f32 %v975, 0.0
        %v1008 = vmax.f32 %v976, 0.0
        %v1009 = vmax.f32 %v977, 0.0
        %v1010 = vmax.f32 %v978, 0.0
        %v1011 = vmax.f32 %v979, 0.0
        %v1012 = vmax.f32 %v980, 0.0
        %v1013 = vmax.f32 %v981, 0.0
        %v1014 = vmax.f32 %v982, 0.0
        %v1015 = vmax.f32 %v983, 0.0
        %v1016 = vmax.f32 %v984, 0.0
        %v1017 = vmax.f32 %v985, 0.0
        %v1018 = vmax.f32 %v986, 0.0
        %v1019 = vmax.f32 %v987, 0.0
        %v1020 = vmax.f32 %v988, 0.0
        %v1021 = vmax.f32 %v989, 0.0
        %v1022 = vmax.f32 %v990, 0.0
        %v1023 = vmax.f32 %v991, 0.0
        %v1024 = vmax.f32 %v992, 0.0
        %v1025 = vmax.f32 %v993, 0.0
        %v1026 = vmax.f32 %v994, 0.0
        %v1027 = vmax.f32 %v995, 0.0
        %v1028 = vmax.f32 %v996, 0.0
        %v1029 = vmax.f32 %v997, 0.0
        %v1030 = vmax.f32 %v998, 0.0
        %v1031 = vmax.f32 %v999, 0.0
        %v1032 = vmax.f32 %v1000, 0.0
        %v1033 = vmax.f32 %v1001, 0.0
        %v1034 = vmax.f32 %v1002, 0.0
        %v1035 = vmax.f32 %v1003, 0.0
        %v1036 = vmax.f32 %v1004, %v1005
        %v1037 = vmax.f32 %v1012, %v1013
        %v1038 = vmax.f32 %v1020, %v1021
        %v1039 = vmax.f32 %v1028, %v1029
        %v1040 = vmax.f32 %v1036, %v1006
        %v1041 = vmax.f32 %v1037, %v1014
        %v1042 = vmax.f32 %v1038, %v1022
        %v1043 = vmax.f32 %v1039, %v1030
        %v1044 = vmax.f32 %v1040, %v1007
        %v1045 = vmax.f32 %v1041, %v1015
        %v1046 = vmax.f32 %v1042, %v1023
        %v1047 = vmax.f32 %v1043, %v1031
        %v1048 = vmax.f32 %v1044, %v1008
        %v1049 = vmax.f32 %v1045, %v1016
        %v1050 = vmax.f32 %v1046, %v1024
        %v1051 = vmax.f32 %v1047, %v1032
        %v1052 = vmax.f32 %v1048, %v1009
        %v1053 = vmax.f32 %v1049, %v1017
        %v1054 = vmax.f32 %v1050, %v1025
        %v1055 = vmax.f32 %v1051, %v1033
        %v1056 = vmax.f32 %v1052, %v1010
        %v1057 = vmax.f32 %v1053, %v1018
        %v1058 = vmax.f32 %v1054, %v1026
        %v1059 = vmax.f32 %v1055, %v1034
        %v1060 = vmax.f32 %v1056, %v1011
        %v1061 = vmax.f32 %v1057, %v1019
        %v1062 = vmax.f32 %v1058, %v1027
        %v1063 = vmax.f32 %v1059, %v1035
        %1064 = vst [vmem:[%s163] sm:$0xff] %v1060
        %1065 = vst [vmem:[%s163 + $0x8] sm:$0xff] %v1061
        %1066 = vst [vmem:[%s163 + $0x10] sm:$0xff] %v1062
        %1067 = vst [vmem:[%s163 + $0x18] sm:$0xff] %v1063
        %s1068 = sand.u32 %s93, 1
        %s1069 = scalar_lea.sflag [#allocation3], %s1068
        %s1070 = sand.u32 %s93, 1
        %s1071 = smul.addr %s1070, 32
        %s1072 = scalar_lea.vmem [#allocation2], %s1071
        // Predicated region
        $region33: #{tpu_custom_call.1} parent=31 // pred_check
          %p1073 = pneg %p103
        $region34: #{tpu_custom_call.1} parent=31 // pred_check_branch
          %1075 = sbr.rel (%p1073) target = $region36
        $region35: #{tpu_custom_call.1} parent=31 // pred_region
          %1077 = vsyncadd %s1069, 0
          %s1078 = smul.addr %s17, 4
          %s1079 = smul.addr %s1078, 8
          %s1080 = scalar_lea.hbm %s3, %s1079
          %s1081 = sshll.u32 %s1072, 4
          %s1082 = int_to_ptr.vmem [resolvable:$true] %s1081
          %s1083 = sshll.u32 %s1080, 4
          %s1084 = int_to_ptr.hbm [resolvable:$true] %s1083
          %1089 = dma.vmem_to_hbm [thread:$0]  %s1082, 512, %s1084, %s1069, 128, 128, 8
        $region36: #{tpu_custom_call.1} parent=31 // pred_fallthru
          _
      $region32: #{tpu_custom_call.1} parent=5 // pred_fallthru
        _
      %p1090 = scmp.le.s32.totalorder 2, %s12
      // Predicated region
      $region37: #{tpu_custom_call.1} parent=5 // pred_check
        %p1091 = pneg %p1090
      $region38: #{tpu_custom_call.1} parent=5 // pred_check_branch
        %1093 = sbr.rel (%p1091) target = $region40
      $region39: #{tpu_custom_call.1} parent=5 // pred_region
        %s1094 = ssub.s32 %s12, 2
        // Predicated region
        $region41: #{tpu_custom_call.1} parent=39 // pred_check
          %p1095 = pneg %p109
        $region42: #{tpu_custom_call.1} parent=39 // pred_check_branch
          %1097 = sbr.rel (%p1095) target = $region44
        $region43: #{tpu_custom_call.1} parent=39 // pred_region
          %s1098 = sand.u32 %s94, 1
          %s1099 = scalar_lea.sflag [#allocation3], %s1098
          %s1100 = sand.u32 %s94, 1
          %s1101 = smul.addr %s1100, 32
          %s1102 = scalar_lea.vmem [#allocation2], %s1101
          %1104 = dma.done %s1099, 512
        $region44: #{tpu_custom_call.1} parent=39 // pred_fallthru
          _
      $region40: #{tpu_custom_call.1} parent=5 // pred_fallthru
        _
    $region6: #{tpu_custom_call.1} parent=1 // loop_footer
      %s16 = sadd.s32 1, %s12
    $region7: #{tpu_custom_call.1} parent=1 // loop_footer_branch
      %11 = sbr.rel target = $region3
    $region8: #{tpu_custom_call.1} parent=1 // loop_exit
      _
    %1105 = vsyncpa [#allocation3], 1
    %s1106 = scalar_lea.sflag [#allocation3], 1
    %1107 = vsyncpa %s1106, 1

</llo_original>
